<compile_context>
chip_gen: v7x
topology: tpu7x:2x2x1
jax: 0.10.0
libtpu: 0.0.40
codegen_flags: <defaults>
</compile_context>

<pallas_src>
import jax
import jax.numpy as jnp
from jax.experimental import pallas as pl
from jax.experimental.pallas import tpu as pltpu

_EPS = 1e-12                      # torch F.normalize default eps
# Module default p=1; after relu, |a| == a, so the L1 norm is a plain lane-sum.

_PER_BLOCK_BUDGET_BYTES = 4 * 1024 * 1024      # ~4 MiB per block buffer
_VMEM_LIMIT_BYTES = 32 * 1024 * 1024           # safe on v5e / v6e / v7x
_MAX_ROW_TILE = 1024                           # diminishing returns beyond this


def _round_up(x: int, m: int) -> int:
    return ((x + m - 1) // m) * m


def _sublane_multiple(itemsize: int) -> int:
    # 8 rows per f32 vreg sublane tile; sub-32-bit dtypes pack along sublanes.
    return max(8, 32 // max(1, itemsize))


def _pick_row_tile(R: int, D: int, itemsize: int) -> int:
    sub = _sublane_multiple(itemsize)
    # in + out, each double-buffered -> ~4 live copies of the block.
    t = _PER_BLOCK_BUDGET_BYTES // max(1, D * itemsize)
    t = (t // sub) * sub
    t = max(sub, min(t, _MAX_ROW_TILE))
    # Never tile larger than the (sublane-rounded) number of rows.
    t = min(t, _round_up(R, sub))
    return t


def _normalised_relu_kernel(x_ref, o_ref):
    # x_ref / o_ref: (row_tile, D) blocks in VMEM.
    x = x_ref[...]
    a = jnp.maximum(x, jnp.zeros_like(x))                 # relu (VPU), input dtype
    a32 = a.astype(jnp.float32)                           # f32 accumulation
    norm = jnp.sum(a32, axis=-1, keepdims=True)           # L1 norm, lane reduce (XLU)
    denom = jnp.maximum(norm, jnp.float32(_EPS))          # eps clamp in f32
    o_ref[...] = (a32 / denom).astype(o_ref.dtype)        # exact divide; cast back


def normalised_relu(x: jax.Array, row_tile: int | None = None) -> jax.Array:
    """relu followed by L1-normalization along the last axis (Pallas TPU kernel)."""
    orig_shape = x.shape
    D = int(orig_shape[-1])
    R = 1
    for d in orig_shape[:-1]:
        R *= int(d)
    x2 = x.reshape(R, D)

    itemsize = jnp.dtype(x.dtype).itemsize
    sub = _sublane_multiple(itemsize)
    if row_tile is None:
        row_tile = _pick_row_tile(R, D, itemsize)
    else:
        row_tile = max(sub, _round_up(int(row_tile), sub))
        row_tile = min(row_tile, _round_up(R, sub))

    # Pad rows up to a multiple of the tile; zero rows normalize to zero (0 / eps).
    R_pad = _round_up(R, row_tile)
    if R_pad != R:
        x2 = jnp.pad(x2, ((0, R_pad - R), (0, 0)))

    grid = R_pad // row_tile

    out2 = pl.pallas_call(
        _normalised_relu_kernel,
        out_shape=jax.ShapeDtypeStruct((R_pad, D), x.dtype),
        grid_spec=pltpu.PrefetchScalarGridSpec(
            num_scalar_prefetch=0,
            grid=(grid,),
            in_specs=[pl.BlockSpec((row_tile, D), lambda i: (i, 0))],
            out_specs=pl.BlockSpec((row_tile, D), lambda i: (i, 0)),
        ),
        compiler_params=pltpu.CompilerParams(
            dimension_semantics=("parallel",),          # shards row grid across v7x TCs
            vmem_limit_bytes=_VMEM_LIMIT_BYTES,
        ),
    )(x2)

    if R_pad != R:
        out2 = out2[:R]
    return out2.reshape(orig_shape)


def _reference(x: jax.Array) -> jax.Array:
    a = jnp.maximum(x.astype(jnp.float32), 0.0)
    norm = jnp.sum(jnp.abs(a), axis=-1, keepdims=True)
    return (a / jnp.maximum(norm, _EPS)).astype(x.dtype)


if __name__ == "__main__":
    key = jax.random.PRNGKey(0)

    # Case 1: small shape consistent with the module (batch=2, seq=8, hidden=32), f32.
    x1 = jax.random.normal(key, (2, 8, 32), dtype=jnp.float32)
    out1 = jax.block_until_ready(normalised_relu(x1))
    ref1 = _reference(x1)
    assert out1.shape == x1.shape
    assert jnp.allclose(out1, ref1, atol=1e-6, rtol=1e-6)

    # Case 2: row count not divisible by the tile -> exercises padding + multi-block grid.
    k2, k3 = jax.random.split(key)
    x2 = jax.random.normal(k2, (5, 40, 32), dtype=jnp.float32)   # R = 200
    out2 = jax.block_until_ready(normalised_relu(x2, row_tile=64))  # pads 200 -> 256, grid=4
    ref2 = _reference(x2)
    assert jnp.allclose(out2, ref2, atol=1e-6, rtol=1e-6)

    # Case 3: bf16 input -> f32 accumulation path, packed-sublane tile multiple (16).
    x3 = jax.random.normal(k3, (2, 8, 32), dtype=jnp.bfloat16)
    out3 = jax.block_until_ready(normalised_relu(x3))
    ref3 = _reference(x3)
    assert jnp.allclose(out3.astype(jnp.float32), ref3.astype(jnp.float32),
                        atol=1e-2, rtol=1e-2)

    print("KERNEL_OK")
</pallas_src>

<mosaic_0001>
module attributes {stable_mosaic.version = 11 : i64} {
  func.func @_normalised_relu_kernel(%arg0: i32, %arg1: memref<16x32xf32, #tpu.memory_space<vmem>>, %arg2: memref<16x32xf32, #tpu.memory_space<vmem>>) attributes {dimension_semantics = [#tpu.dimension_semantics<parallel>], iteration_bounds = array<i64: 1>, scalar_prefetch = 0 : i64, scratch_operands = 0 : i64, tpu.core_type = #tpu.core_type<tc>, window_params = [{transform_indices = @transform_0, window_bounds = array<i64: 16, 32>}, {transform_indices = @transform_1, window_bounds = array<i64: 16, 32>}]} {
    %c0 = arith.constant 0 : index
    %c0_0 = arith.constant 0 : index
    %0 = vector.load %arg1[%c0, %c0_0] : memref<16x32xf32, #tpu.memory_space<vmem>>, vector<16x32xf32>
    %cst = arith.constant 0.000000e+00 : f32
    %1 = vector.broadcast %cst : f32 to vector<16x32xf32>
    %2 = arith.maximumf %0, %1 : vector<16x32xf32>
    %cst_1 = arith.constant dense<0.000000e+00> : vector<16xf32>
    %3 = vector.multi_reduction <add>, %2, %cst_1 [1] : vector<16x32xf32> to vector<16xf32>
    %4 = vector.shape_cast %3 : vector<16xf32> to vector<16x1xf32>
    %cst_2 = arith.constant 9.99999996E-13 : f32
    %5 = vector.broadcast %cst_2 : f32 to vector<16x1xf32>
    %6 = arith.maximumf %4, %5 : vector<16x1xf32>
    %7 = vector.broadcast %6 : vector<16x1xf32> to vector<16x32xf32>
    %8 = arith.divf %2, %7 : vector<16x32xf32>
    %c0_3 = arith.constant 0 : index
    %c0_4 = arith.constant 0 : index
    %9 = vector.load %arg2[%c0_3, %c0_4] : memref<16x32xf32, #tpu.memory_space<vmem>>, vector<16x32xf32>
    tpu.vector_store %arg2[%c0_3, %c0_4], %8 {strides = array<i32>} : memref<16x32xf32, #tpu.memory_space<vmem>>, vector<16x32xf32>,
    return
  }
  func.func @transform_0(%arg0: i32) -> (i32, i32) {
    %c0_i32 = arith.constant 0 : i32
    %c0_i32_0 = arith.constant 0 : i32
    return %arg0, %c0_i32 : i32, i32
  }
  func.func @transform_1(%arg0: i32) -> (i32, i32) {
    %c0_i32 = arith.constant 0 : i32
    %c0_i32_0 = arith.constant 0 : i32
    return %arg0, %c0_i32 : i32, i32
  }
}

</mosaic_0001>

<llo_original>
// kernel: tpu_custom_call.1
$region0: #{tpu_custom_call.1}
  #allocation0 [shape = 'u32[]', space=smem, size = 0x4, offset = 0x4, fixed_abs, tag = 'smem constant byte address 0x4 - core index']
  #allocation1 [shape = 'u32[144,128]{1,0:T(1,128)}', space=vmem, size = 0x12000, scoped, tag = 'internal scratch']
  %s0 = inlined_call_operand.hbm [shape: f32[16,32], index: 0, kind: input, shape index: {}]
  %s1 = inlined_call_operand.hbm [shape: f32[16,32], index: 1, kind: output, shape index: {}]
  %s2 = sld [smem:[#allocation0]]
  $region18: #{tpu_custom_call.1} parent=0
    _
  %s4 = ssub.s32 1, %s2
  %s5 = scalar_select 0, %s4, %s2
  $region1: #{tpu_custom_call.1} parent=0
    #allocation2 [shape = 'u8[8192]{0}', space=vmem, size = 0x2000, scoped, tag = 'input window, operand 0, single buffered']
    #allocation3 [shape = 's32[1]{0}', space=sflag, size = 0x4, scoped, tag = 'scoped memory for tpu_custom_call.1']
    #allocation4 [shape = 's32[1]{0}', space=sflag, size = 0x4, scoped, tag = 'scoped memory for tpu_custom_call.1']
    #allocation5 [shape = 'u8[8192]{0}', space=vmem, size = 0x2000, scoped, tag = 'output window, operand 0, single buffered']
    %6 = vsyncpa [#allocation3], 0
    %7 = vsyncpa [#allocation4], 0
    // Predicated region
    $region2: #{tpu_custom_call.1} parent=1 // pred_check
      _
    $region3: #{tpu_custom_call.1} parent=1 // pred_check_branch
      %9 = sbr.rel (0) target = $region5
    $region4: #{tpu_custom_call.1} parent=1 // pred_region
      %s11 = ssub.s32 256, 256
      %12 = vsyncadd [#allocation3], %s11
      %s13 = sshll.u32 [#allocation2], 4
      %s14 = int_to_ptr.vmem [resolvable:$true] %s13
      %19 = dma.hbm_to_vmem [thread:$0]  %s0, 256, %s14, [#allocation3], 128, 128, 8
    $region5: #{tpu_custom_call.1} parent=1 // pred_fallthru
      _
    // Predicated region
    $region6: #{tpu_custom_call.1} parent=1 // pred_check
      _
    $region7: #{tpu_custom_call.1} parent=1 // pred_check_branch
      %21 = sbr.rel (0) target = $region9
    $region8: #{tpu_custom_call.1} parent=1 // pred_region
      %22 = dma.done [#allocation3], 256
    $region9: #{tpu_custom_call.1} parent=1 // pred_fallthru
      _
    %v23 = vld [vmem:[#allocation2] sm:$0xff]
    %v24 = vld [vmem:[#allocation2 + $0x8] sm:$0xff]
    %v25 = vmax.f32 %v23, 0.0
    %v26 = vmax.f32 %v24, 0.0
    %vm27 = vcmask 261120
    %v28 = vsel %vm27, %v25, 0.0
    %29 = vadd.xlane.f32.xlu0 %v28
    %v30 = vpop.xlane.xlu0 %29
    %v31 = vsel %vm27, %v26, 0.0
    %32 = vadd.xlane.f32.xlu0 %v31
    %v33 = vpop.xlane.xlu0 %32
    %v34 = vmax.f32 %v30, 1e-12
    %v35 = vmax.f32 %v33, 1e-12
    %v36 = vrcp.pop %v34
    %v37 = vmul.f32 %v25, %v36
    %v38 = vrcp.pop %v35
    %v39 = vmul.f32 %v26, %v38
    %40 = vst.msk [vmem:[#allocation5] sm:$0xff] %vm27, %v37
    %41 = vst.msk [vmem:[#allocation5 + $0x8] sm:$0xff] %vm27, %v39
    // Predicated region
    $region10: #{tpu_custom_call.1} parent=1 // pred_check
      _
    $region11: #{tpu_custom_call.1} parent=1 // pred_check_branch
      %43 = sbr.rel (0) target = $region13
    $region12: #{tpu_custom_call.1} parent=1 // pred_region
      %s45 = ssub.s32 256, 256
      %46 = vsyncadd [#allocation4], %s45
      %s47 = sshll.u32 [#allocation5], 4
      %s48 = int_to_ptr.vmem [resolvable:$true] %s47
      %53 = dma.vmem_to_hbm [thread:$0]  %s48, 256, %s1, [#allocation4], 128, 128, 8
    $region13: #{tpu_custom_call.1} parent=1 // pred_fallthru
      _
    // Predicated region
    $region14: #{tpu_custom_call.1} parent=1 // pred_check
      _
    $region15: #{tpu_custom_call.1} parent=1 // pred_check_branch
      %55 = sbr.rel (0) target = $region17
    $region16: #{tpu_custom_call.1} parent=1 // pred_region
      %56 = dma.done [#allocation4], 256
    $region17: #{tpu_custom_call.1} parent=1 // pred_fallthru
      _
    %57 = vsyncpa [#allocation3], 1
    %58 = vsyncpa [#allocation4], 1

</llo_original>
